<compile_context>
chip_gen: v5e
topology: v5e:2x2
jax: 0.10.0
libtpu: 0.0.40
codegen_flags: <defaults>
</compile_context>

<pallas_src>
import functools
import math

import jax
import jax.numpy as jnp
from jax.experimental import pallas as pl
from jax.experimental.pallas import tpu as pltpu


# --------------------------------------------------------------------------
# Parameter setup (mirrors PosEnc.__init__)
# --------------------------------------------------------------------------
def make_pos_encoding(d_m: int, size_limit: int = 5000) -> jnp.ndarray:
    pos = jnp.arange(size_limit, dtype=jnp.float32)[:, None]              # (L, 1)
    div = jnp.exp(jnp.arange(0, d_m, 2, dtype=jnp.float32)
                  * (-math.log(10000.0) / d_m))                           # (d_m/2,)
    pe = jnp.zeros((size_limit, d_m), dtype=jnp.float32)
    pe = pe.at[:, 0::2].set(jnp.sin(pos * div))
    pe = pe.at[:, 1::2].set(jnp.cos(pos * div))
    return pe[:, None, :]                                                 # (L, 1, d_m)


# --------------------------------------------------------------------------
# Pallas kernels
# --------------------------------------------------------------------------
def _posenc_eval_kernel(x_ref, pe_ref, o_ref, *, batch: int):
    # x_ref: (TS, B*D), pe_ref: (TS, D) -> broadcast pe across the batch.
    pe = pe_ref[...]
    if batch > 1:
        pe = jnp.tile(pe, (1, batch))
    o_ref[...] = x_ref[...] + pe


def _posenc_train_kernel(x_ref, pe_ref, bits_ref, o_ref, *,
                         batch: int, threshold: int, scale: float):
    pe = pe_ref[...]
    if batch > 1:
        pe = jnp.tile(pe, (1, batch))
    y = x_ref[...] + pe
    # keep element iff bits >= threshold  (P(drop) = threshold / 2^32 ~= p)
    keep = bits_ref[...] >= jnp.uint32(threshold)
    o_ref[...] = jnp.where(keep, y * jnp.float32(scale), jnp.float32(0.0))


# --------------------------------------------------------------------------
# Wrapper
# --------------------------------------------------------------------------
def _choose_tile_rows(S: int, bytes_per_row: int, budget: int = 4 << 20) -> int:
    """Rows per grid step: keep one block set ~<= 4 MiB so double-buffered
    blocks fit every generation's default scoped VMEM."""
    ts = min(S, max(1, budget // max(bytes_per_row, 1)))
    if ts < S:
        ts = min(S, max(8, (ts // 8) * 8))   # keep sublane dim a multiple of 8
    return ts


def pos_enc_forward(x, p_enc, *, p: float = 0.2, training: bool = True,
                    rng_key=None):
    """x: (S, B, D) float32; p_enc: (size_limit, 1, D) float32."""
    S, B, D = x.shape
    BD = B * D
    x2d = x.reshape(S, BD)                    # free reshape (contiguous memory)
    pe2d = p_enc[:S, 0, :]                    # (S, D) — glue slice

    use_dropout = training and p > 0.0
    if use_dropout and p >= 1.0:
        raise ValueError("dropout p must be < 1.0 (1/(1-p) would be inf)")

    itemsize = 4
    bytes_per_row = (2 * BD + D) * itemsize + (BD * 4 if use_dropout else 0)
    ts = _choose_tile_rows(S, bytes_per_row)
    grid = (pl.cdiv(S, ts),)

    x_spec = pl.BlockSpec((ts, BD), lambda i: (i, 0))
    pe_spec = pl.BlockSpec((ts, D), lambda i: (i, 0))
    out_spec = pl.BlockSpec((ts, BD), lambda i: (i, 0))

    compiler_params = pltpu.CompilerParams(
        dimension_semantics=("parallel",),       # independent steps -> megacore OK
        vmem_limit_bytes=32 * 1024 * 1024,
    )

    if use_dropout:
        if rng_key is None:
            rng_key = jax.random.PRNGKey(0)
        bits = jax.random.bits(rng_key, (S, BD), dtype=jnp.uint32)
        threshold = min(int(round(p * (1 << 32))), (1 << 32) - 1)
        kernel = functools.partial(_posenc_train_kernel, batch=B,
                                   threshold=threshold, scale=1.0 / (1.0 - p))
        out2d = pl.pallas_call(
            kernel,
            out_shape=jax.ShapeDtypeStruct((S, BD), x.dtype),
            grid=grid,
            in_specs=[x_spec, pe_spec, x_spec],
            out_specs=out_spec,
            compiler_params=compiler_params,
        )(x2d, pe2d, bits)
    else:
        kernel = functools.partial(_posenc_eval_kernel, batch=B)
        out2d = pl.pallas_call(
            kernel,
            out_shape=jax.ShapeDtypeStruct((S, BD), x.dtype),
            grid=grid,
            in_specs=[x_spec, pe_spec],
            out_specs=out_spec,
            compiler_params=compiler_params,
        )(x2d, pe2d)

    return out2d.reshape(S, B, D)


# --------------------------------------------------------------------------
# Demo / self-check
# --------------------------------------------------------------------------
if __name__ == "__main__":
    SEQ, BATCH, D_M = 8, 2, 32
    DROPOUT_P = 0.2

    key = jax.random.PRNGKey(0)
    k_x, k_drop = jax.random.split(key)
    x = jax.random.normal(k_x, (SEQ, BATCH, D_M), dtype=jnp.float32)
    p_enc = make_pos_encoding(D_M, size_limit=5000)

    # Eval-mode pass (dropout = identity): check against plain-JAX reference.
    out_eval = jax.block_until_ready(
        pos_enc_forward(x, p_enc, p=DROPOUT_P, training=False))
    ref_eval = x + p_enc[:SEQ]
    assert out_eval.shape == (SEQ, BATCH, D_M)
    assert jnp.allclose(out_eval, ref_eval, atol=1e-6), "eval-mode mismatch"

    # Training-mode pass: every output is either 0 or (x + pe) / (1 - p).
    out_train = jax.block_until_ready(
        pos_enc_forward(x, p_enc, p=DROPOUT_P, training=True, rng_key=k_drop))
    scaled_ref = ref_eval / (1.0 - DROPOUT_P)
    ok = jnp.logical_or(out_train == 0.0,
                        jnp.abs(out_train - scaled_ref) < 1e-5)
    assert bool(jnp.all(ok)), "train-mode dropout values inconsistent"

    print("KERNEL_OK")
</pallas_src>

<mosaic_0001>
module attributes {stable_mosaic.version = 11 : i64} {
  func.func @_posenc_eval_kernel(%arg0: i32, %arg1: memref<8x64xf32, #tpu.memory_space<vmem>>, %arg2: memref<8x32xf32, #tpu.memory_space<vmem>>, %arg3: memref<8x64xf32, #tpu.memory_space<vmem>>) attributes {dimension_semantics = [#tpu.dimension_semantics<parallel>], iteration_bounds = array<i64: 1>, scalar_prefetch = 0 : i64, scratch_operands = 0 : i64, tpu.core_type = #tpu.core_type<tc>, window_params = [{transform_indices = @transform_0, window_bounds = array<i64: 8, 64>}, {transform_indices = @transform_1, window_bounds = array<i64: 8, 32>}, {transform_indices = @transform_2, window_bounds = array<i64: 8, 64>}]} {
    %c0 = arith.constant 0 : index
    %c0_0 = arith.constant 0 : index
    %0 = vector.load %arg2[%c0, %c0_0] : memref<8x32xf32, #tpu.memory_space<vmem>>, vector<8x32xf32>
    %1 = tpu.concatenate %0, %0 in 1 : vector<8x32xf32>, vector<8x32xf32> -> vector<8x64xf32>
    %c0_1 = arith.constant 0 : index
    %c0_2 = arith.constant 0 : index
    %2 = vector.load %arg1[%c0_1, %c0_2] : memref<8x64xf32, #tpu.memory_space<vmem>>, vector<8x64xf32>
    %3 = arith.addf %2, %1 : vector<8x64xf32>
    %c0_3 = arith.constant 0 : index
    %c0_4 = arith.constant 0 : index
    %4 = vector.load %arg3[%c0_3, %c0_4] : memref<8x64xf32, #tpu.memory_space<vmem>>, vector<8x64xf32>
    tpu.vector_store %arg3[%c0_3, %c0_4], %3 {strides = array<i32>} : memref<8x64xf32, #tpu.memory_space<vmem>>, vector<8x64xf32>,
    return
  }
  func.func @transform_0(%arg0: i32) -> (i32, i32) {
    %c0_i32 = arith.constant 0 : i32
    %c0_i32_0 = arith.constant 0 : i32
    return %arg0, %c0_i32 : i32, i32
  }
  func.func @transform_1(%arg0: i32) -> (i32, i32) {
    %c0_i32 = arith.constant 0 : i32
    %c0_i32_0 = arith.constant 0 : i32
    return %arg0, %c0_i32 : i32, i32
  }
  func.func @transform_2(%arg0: i32) -> (i32, i32) {
    %c0_i32 = arith.constant 0 : i32
    %c0_i32_0 = arith.constant 0 : i32
    return %arg0, %c0_i32 : i32, i32
  }
}

</mosaic_0001>

<llo_original>
// kernel: tpu_custom_call.1
$region0: #{tpu_custom_call.1}
  #allocation0 [shape = 'u32[]', space=smem, size = 0x4, offset = 0x4, fixed_abs, tag = 'smem constant byte address 0x4 - core index']
  #allocation1 [shape = 'u32[72,128]{1,0:T(1,128)}', space=vmem, size = 0x9000, scoped, tag = 'internal scratch']
  %s0 = inlined_call_operand.hbm [shape: f32[8,64], index: 0, kind: input, shape index: {}]
  %s1 = inlined_call_operand.hbm [shape: f32[8,32], index: 1, kind: input, shape index: {}]
  %s2 = inlined_call_operand.hbm [shape: f32[8,64], index: 2, kind: output, shape index: {}]
  %s3 = sld [smem:[#allocation0]]
  $region26: #{tpu_custom_call.1} parent=0
    _
  %s5 = ssub.s32 1, %s3
  %s6 = scalar_select 0, %s5, %s3
  $region1: #{tpu_custom_call.1} parent=0
    #allocation2 [shape = 'u8[4096]{0}', space=vmem, size = 0x1000, scoped, tag = 'input window, operand 0, single buffered']
    #allocation3 [shape = 's32[1]{0}', space=sflag, size = 0x4, scoped, tag = 'scoped memory for tpu_custom_call.1']
    #allocation4 [shape = 's32[1]{0}', space=sflag, size = 0x4, scoped, tag = 'scoped memory for tpu_custom_call.1']
    #allocation5 [shape = 'u8[4096]{0}', space=vmem, size = 0x1000, scoped, tag = 'input window, operand 1, single buffered']
    #allocation6 [shape = 's32[1]{0}', space=sflag, size = 0x4, scoped, tag = 'scoped memory for tpu_custom_call.1']
    #allocation7 [shape = 'u8[4096]{0}', space=vmem, size = 0x1000, scoped, tag = 'output window, operand 0, single buffered']
    %7 = vsyncpa [#allocation3], 0
    %8 = vsyncpa [#allocation6], 0
    %9 = vsyncpa [#allocation4], 0
    // Predicated region
    $region2: #{tpu_custom_call.1} parent=1 // pred_check
      _
    $region3: #{tpu_custom_call.1} parent=1 // pred_check_branch
      %11 = sbr.rel (0) target = $region5
    $region4: #{tpu_custom_call.1} parent=1 // pred_region
      %13 = vsyncadd [#allocation3], 0
      %s15 = sshll.u32 %s0, 4
      %s16 = int_to_ptr.hbm [resolvable:$true] %s15
      %s17 = sshll.u32 [#allocation2], 4
      %s18 = int_to_ptr.vmem [resolvable:$true] %s17
      %20 = dma.hbm_to_vmem [thread:$0]  %s16, 128, %s18, [#allocation3]
    $region5: #{tpu_custom_call.1} parent=1 // pred_fallthru
      _
    // Predicated region
    $region6: #{tpu_custom_call.1} parent=1 // pred_check
      _
    $region7: #{tpu_custom_call.1} parent=1 // pred_check_branch
      %22 = sbr.rel (0) target = $region9
    $region8: #{tpu_custom_call.1} parent=1 // pred_region
      %24 = vsyncadd [#allocation6], 0
      %s26 = sshll.u32 %s1, 4
      %s27 = int_to_ptr.hbm [resolvable:$true] %s26
      %s28 = sshll.u32 [#allocation5], 4
      %s29 = int_to_ptr.vmem [resolvable:$true] %s28
      %31 = dma.hbm_to_vmem [thread:$0]  %s27, 128, %s29, [#allocation6]
    $region9: #{tpu_custom_call.1} parent=1 // pred_fallthru
      _
    // Predicated region
    $region10: #{tpu_custom_call.1} parent=1 // pred_check
      _
    $region11: #{tpu_custom_call.1} parent=1 // pred_check_branch
      %33 = sbr.rel (0) target = $region13
    $region12: #{tpu_custom_call.1} parent=1 // pred_region
      %35 = dma.done [#allocation3], 128
    $region13: #{tpu_custom_call.1} parent=1 // pred_fallthru
      _
    // Predicated region
    $region14: #{tpu_custom_call.1} parent=1 // pred_check
      _
    $region15: #{tpu_custom_call.1} parent=1 // pred_check_branch
      %37 = sbr.rel (0) target = $region17
    $region16: #{tpu_custom_call.1} parent=1 // pred_region
      %39 = dma.done [#allocation6], 128
    $region17: #{tpu_custom_call.1} parent=1 // pred_fallthru
      _
    %v40 = vld [vmem:[#allocation5] sm:$0xff]
    %42 = vrot.lane.b32.xlu0 %v40, 32
    %v43 = vpop.permute.xlu0 %42
    %vm45 = vcmask 261120
    %v46 = vsel %vm45, %v40, %v43
    %v47 = vld [vmem:[#allocation2] sm:$0xff]
    %v48 = vadd.f32 %v47, %v46
    %vm49 = vcmask 523264
    %50 = vst.msk [vmem:[#allocation7] sm:$0xff] %vm49, %v48
    // Predicated region
    $region18: #{tpu_custom_call.1} parent=1 // pred_check
      _
    $region19: #{tpu_custom_call.1} parent=1 // pred_check_branch
      %52 = sbr.rel (0) target = $region21
    $region20: #{tpu_custom_call.1} parent=1 // pred_region
      %54 = vsyncadd [#allocation4], 0
      %s56 = sshll.u32 [#allocation7], 4
      %s57 = int_to_ptr.vmem [resolvable:$true] %s56
      %s58 = sshll.u32 %s2, 4
      %s59 = int_to_ptr.hbm [resolvable:$true] %s58
      %61 = dma.vmem_to_hbm [thread:$0]  %s57, 128, %s59, [#allocation4]
    $region21: #{tpu_custom_call.1} parent=1 // pred_fallthru
      _
    // Predicated region
    $region22: #{tpu_custom_call.1} parent=1 // pred_check
      _
    $region23: #{tpu_custom_call.1} parent=1 // pred_check_branch
      %63 = sbr.rel (0) target = $region25
    $region24: #{tpu_custom_call.1} parent=1 // pred_region
      %65 = dma.done [#allocation4], 128
    $region25: #{tpu_custom_call.1} parent=1 // pred_fallthru
      _
    %66 = vsyncpa [#allocation3], 1
    %67 = vsyncpa [#allocation6], 1
    %68 = vsyncpa [#allocation4], 1

</llo_original>
